<compile_context>
chip_gen: v7x
topology: tpu7x:2x2x1
jax: 0.10.0
libtpu: 0.0.40
codegen_flags: <defaults>
</compile_context>

<pallas_src>
import functools

import jax
import jax.numpy as jnp
from jax.experimental import pallas as pl
from jax.experimental.pallas import tpu as pltpu

_LANES = 128                 # vreg / VMEM lane width
_SUBLANES = 8                # f32 sublane count -> (8, 128) tiling rule
_DEFAULT_BLOCK_ROWS = 2048   # (2048, 128) f32 = 1 MiB/buffer; safe on v5e/v6e/v7x.
                             # v7x can go 4096-8192 (keep 2*(in+out) <= ~24 MiB).
_TINY_N_THRESHOLD = 1 << 18  # 256K elems (1 MiB f32): below this plain XLA wins.


def _round_up(a: int, b: int) -> int:
    return ((a + b - 1) // b) * b


def lr_kernel(w_ref, b_ref, x_ref, o_ref):
    # w_ref: (1, 1) SMEM, b_ref: (1,) SMEM, x_ref/o_ref: (block_rows, 128) VMEM.
    # Two VPU ops per 1024-element vreg; the binding resource is the HBM
    # DMA / store path, which the lane-dense layout keeps saturated.
    w = w_ref[0, 0]
    b = b_ref[0]
    o_ref[...] = x_ref[...] * w + b


@functools.partial(jax.jit, static_argnames=("block_rows",))
def _lr_forward_pallas(x, weight, bias, *, block_rows=_DEFAULT_BLOCK_ROWS):
    """Lane-dense tiled Pallas path. x: (N, 1) f32 -> (N, 1) f32."""
    n = x.shape[0]

    # Lane-dense slab: ceil(N / 128) rows, rounded up to the (8, 128) tile so
    # both the array and every block are tile-aligned (pad <= ~4.5 KiB).
    rows = _round_up(pl.cdiv(n, _LANES), _SUBLANES)
    total = rows * _LANES

    # Tile sizing: big tiles to amortize per-step overhead, but keep >= 2 grid
    # blocks when possible so v7x can shard them across its 2 TensorCores.
    block_rows = max(_SUBLANES, _round_up(block_rows, _SUBLANES))
    block_rows = min(block_rows,
                     max(_SUBLANES, _round_up(pl.cdiv(rows, 2), _SUBLANES)))
    grid = (pl.cdiv(rows, block_rows),)   # last block may be partial

    # Repack (N, 1) -> (rows, 128) slab.  Layout plumbing only; under jit the
    # pad/reshape can fuse into the pallas operand (allow_input_fusion below).
    x_flat = jnp.ravel(x)
    pad = total - n
    if pad:
        x_flat = jnp.pad(x_flat, (0, pad))
    x2d = x_flat.reshape(rows, _LANES)

    # Explicit VMEM budget: 2 pipeline buffers x (in + out) x block + headroom,
    # clamped to [16 MiB, 64 MiB] so it is valid on every generation
    # (v7x physical VMEM is 64 MiB per TensorCore).
    block_bytes = block_rows * _LANES * 4
    vmem_limit = int(min(64 << 20, max(16 << 20, 4 * block_bytes + (4 << 20))))

    out2d = pl.pallas_call(
        lr_kernel,
        out_shape=jax.ShapeDtypeStruct((rows, _LANES), x.dtype),
        grid=grid,
        in_specs=[
            pl.BlockSpec(memory_space=pltpu.SMEM),                 # weight (1, 1)
            pl.BlockSpec(memory_space=pltpu.SMEM),                 # bias (1,)
            pl.BlockSpec((block_rows, _LANES), lambda i: (i, 0)),  # x slab
        ],
        out_specs=pl.BlockSpec((block_rows, _LANES), lambda i: (i, 0)),
        compiler_params=pltpu.CompilerParams(
            # 1 TC on v5e/v6e (no-op); shards row tiles across both TCs on v7x.
            dimension_semantics=("parallel",),
            vmem_limit_bytes=vmem_limit,
            # Let XLA fuse the residual pad/reshape into the x operand reads.
            allow_input_fusion=[False, False, True],
        ),
    )(weight, bias, x2d)

    # Drop padding and restore the (N, 1) column layout (reshape is a bitcast;
    # the [:n] slice fuses with downstream consumers under jit).
    return out2d.reshape(total)[:n].reshape(n, 1)


def lr_forward(x, weight, bias, *, force_pallas=False,
               block_rows=_DEFAULT_BLOCK_ROWS):
    """x: (N, 1) f32, weight: (1, 1) f32, bias: (1,) f32 -> (N, 1) f32."""
    n = x.shape[0]
    if not force_pallas and n < _TINY_N_THRESHOLD:
        # XLA's fused x*w+b already hits HBM roofline with no custom-call
        # launch, repack, or pad/slice passes.
        return x * weight[0, 0] + bias[0]
    return _lr_forward_pallas(x, weight, bias, block_rows=block_rows)


if __name__ == "__main__":
    # Deterministic parameter init (mirrors torch.nn.Linear(1, 1) uniform init).
    key = jax.random.PRNGKey(0)
    k_w, k_b = jax.random.split(key)
    weight = jax.random.uniform(k_w, (1, 1), jnp.float32, minval=-1.0, maxval=1.0)
    bias = jax.random.uniform(k_b, (1,), jnp.float32, minval=-1.0, maxval=1.0)

    # Same data as the reference PyTorch script.
    x_small = jnp.array(
        [[3.3], [4.4], [5.5], [6.71], [6.93], [4.168], [9.779], [6.182],
         [7.59], [2.167], [7.042], [10.791], [5.313], [7.997], [3.1]],
        dtype=jnp.float32,
    )

    # 1) Tiny input, Pallas path forced (single (8, 128) block, padded tail).
    out_small = lr_forward(x_small, weight, bias, force_pallas=True)
    jax.block_until_ready(out_small)
    ref_small = x_small @ weight.T + bias
    assert out_small.shape == x_small.shape
    assert jnp.allclose(out_small, ref_small, atol=1e-6), (out_small, ref_small)

    # 2) Larger input exercising the multi-block parallel grid, partial last
    #    block, and padded tail (2 full (2048, 128) blocks + one partial block;
    #    ~2 MiB of f32).  Auto-selects the Pallas path.
    n_big = 2 * _DEFAULT_BLOCK_ROWS * _LANES + 37
    x_big = jax.random.normal(jax.random.PRNGKey(1), (n_big, 1), jnp.float32)
    out_big = lr_forward(x_big, weight, bias)
    jax.block_until_ready(out_big)
    ref_big = x_big * weight[0, 0] + bias[0]
    assert out_big.shape == x_big.shape
    assert jnp.allclose(out_big, ref_big, atol=1e-5)

    # 3) Tiny-N fast path (plain JAX, no kernel launch) still matches.
    out_tiny = lr_forward(x_small, weight, bias)
    jax.block_until_ready(out_tiny)
    assert jnp.allclose(out_tiny, ref_small, atol=1e-6)

    print("KERNEL_OK")
</pallas_src>

<mosaic_0001>
module attributes {stable_mosaic.version = 11 : i64} {
  func.func @lr_kernel(%arg0: i32, %arg1: memref<1x1xf32, #tpu.memory_space<smem>>, %arg2: memref<1xf32, #tpu.memory_space<smem>>, %arg3: memref<8x128xf32, #tpu.memory_space<vmem>>, %arg4: memref<8x128xf32, #tpu.memory_space<vmem>>) attributes {dimension_semantics = [#tpu.dimension_semantics<parallel>], iteration_bounds = array<i64: 1>, scalar_prefetch = 0 : i64, scratch_operands = 0 : i64, tpu.core_type = #tpu.core_type<tc>, window_params = [{transform_indices = @transform_0, window_bounds = array<i64: 1, 1>}, {transform_indices = @transform_1, window_bounds = array<i64: 1>}, {transform_indices = @transform_2, window_bounds = array<i64: 8, 128>}, {transform_indices = @transform_3, window_bounds = array<i64: 8, 128>}]} {
    %c0 = arith.constant 0 : index
    %c0_0 = arith.constant 0 : index
    %0 = memref.load %arg1[%c0, %c0_0] : memref<1x1xf32, #tpu.memory_space<smem>>
    %c0_1 = arith.constant 0 : index
    %1 = memref.load %arg2[%c0_1] : memref<1xf32, #tpu.memory_space<smem>>
    %c0_2 = arith.constant 0 : index
    %c0_3 = arith.constant 0 : index
    %2 = vector.load %arg3[%c0_2, %c0_3] : memref<8x128xf32, #tpu.memory_space<vmem>>, vector<8x128xf32>
    %3 = vector.broadcast %0 : f32 to vector<8x128xf32>
    %4 = arith.mulf %2, %3 : vector<8x128xf32>
    %5 = vector.broadcast %1 : f32 to vector<8x128xf32>
    %6 = arith.addf %4, %5 : vector<8x128xf32>
    %c0_4 = arith.constant 0 : index
    %c0_5 = arith.constant 0 : index
    %7 = vector.load %arg4[%c0_4, %c0_5] : memref<8x128xf32, #tpu.memory_space<vmem>>, vector<8x128xf32>
    tpu.vector_store %arg4[%c0_4, %c0_5], %6 {strides = array<i32>} : memref<8x128xf32, #tpu.memory_space<vmem>>, vector<8x128xf32>,
    return
  }
  func.func @transform_0(%arg0: i32) -> (i32, i32) {
    %c0_i32 = arith.constant 0 : i32
    %c0_i32_0 = arith.constant 0 : i32
    %c0_i32_1 = arith.constant 0 : i32
    return %c0_i32, %c0_i32_0 : i32, i32
  }
  func.func @transform_1(%arg0: i32) -> i32 {
    %c0_i32 = arith.constant 0 : i32
    %c0_i32_0 = arith.constant 0 : i32
    return %c0_i32 : i32
  }
  func.func @transform_2(%arg0: i32) -> (i32, i32) {
    %c0_i32 = arith.constant 0 : i32
    %c0_i32_0 = arith.constant 0 : i32
    return %arg0, %c0_i32 : i32, i32
  }
  func.func @transform_3(%arg0: i32) -> (i32, i32) {
    %c0_i32 = arith.constant 0 : i32
    %c0_i32_0 = arith.constant 0 : i32
    return %arg0, %c0_i32 : i32, i32
  }
}

</mosaic_0001>

<llo_original>
// kernel: _lr_forward_pallas.2
$region0: #{_lr_forward_pallas.2}
  #allocation0 [shape = 'u32[]', space=smem, size = 0x4, offset = 0x4, fixed_abs, tag = 'smem constant byte address 0x4 - core index']
  #allocation1 [shape = 'u32[144,128]{1,0:T(1,128)}', space=vmem, size = 0x12000, scoped, tag = 'internal scratch']
  #allocation2 [shape = 'f32[1,1]{1,0:T(1,128)S(6)}', space=smem, size = 0x200, scoped, tag = 'scoped memory for _lr_forward_pallas.2']
  #allocation3 [shape = 'f32[1]{0:T(128)S(6)}', space=smem, size = 0x200, scoped, tag = 'scoped memory for _lr_forward_pallas.2']
  #allocation4 [shape = 'u32[2048]{0}', space=vmem, size = 0x2000, scoped, tag = 'scoped memory for _lr_forward_pallas.2']
  #allocation5 [shape = 'u32[2048]{0}', space=vmem, size = 0x2000, scoped, tag = 'scoped memory for _lr_forward_pallas.2']
  #allocation6 [shape = 'u32[2048]{0}', space=vmem, size = 0x2000, scoped, tag = 'scoped memory for _lr_forward_pallas.2']
  #allocation7 [shape = 'u32[2048]{0}', space=vmem, size = 0x2000, scoped, tag = 'scoped memory for _lr_forward_pallas.2']
  #allocation8 [shape = 'u32[2048]{0}', space=vmem, size = 0x2000, scoped, tag = 'scoped memory for _lr_forward_pallas.2']
  %s0 = inlined_call_operand.<no memory space> [shape: f32[1,1], index: 0, kind: input, shape index: {}]
  %s1 = inlined_call_operand.<no memory space> [shape: f32[1], index: 1, kind: input, shape index: {}]
  %s2 = inlined_call_operand.vmem [shape: f32[15], index: 2, kind: input, shape index: {}]
  %s3 = inlined_call_operand.<no memory space> [shape: f32[], index: 3, kind: input, shape index: {}]
  %s4 = inlined_call_operand.vmem [shape: f32[8,128], index: 4, kind: output, shape index: {}]
  %s5 = sld [smem:[#allocation0]]
  $region22: #{_lr_forward_pallas.2} parent=0
    _
  %s7 = ssub.s32 1, %s5
  %s8 = scalar_select 0, %s7, %s5
  %9 = sst [smem:[#allocation2]] %s0
  %10 = sst [smem:[#allocation3]] %s1
  %v11 = vstv %s3
  $region1: #{_lr_forward_pallas.2} parent=0
    #allocation9 [shape = 'u8[4096]{0}', space=vmem, size = 0x1000, dematerialized = true, scoped, tag = 'FusionAdapter Buffer %fusion.1 = f32[8,128]{1,0:T(8,128)} fusion(%param_2.2, %param_3), kind=kLoop, calls=%fused_computation.1.clone, metadata={op_name="jit(_lr_forward_pallas)/reshape" stack_frame_id=10}']
    // Predicated region
    $region2: #{_lr_forward_pallas.2} parent=1 // pred_check
      _
    $region3: #{_lr_forward_pallas.2} parent=1 // pred_check_branch
      %13 = sbr.rel (0) target = $region5
    $region4: #{_lr_forward_pallas.2} parent=1 // pred_region
      _
    $region5: #{_lr_forward_pallas.2} parent=1 // pred_fallthru
      _
    // Predicated region
    $region6: #{_lr_forward_pallas.2} parent=1 // pred_check
      _
    $region7: #{_lr_forward_pallas.2} parent=1 // pred_check_branch
      %15 = sbr.rel (0) target = $region9
    $region8: #{_lr_forward_pallas.2} parent=1 // pred_region
      _
    $region9: #{_lr_forward_pallas.2} parent=1 // pred_fallthru
      _
    // Predicated region
    $region10: #{_lr_forward_pallas.2} parent=1 // pred_check
      _
    $region11: #{_lr_forward_pallas.2} parent=1 // pred_check_branch
      %17 = sbr.rel (0) target = $region13
    $region12: #{_lr_forward_pallas.2} parent=1 // pred_region
      _
    $region13: #{_lr_forward_pallas.2} parent=1 // pred_fallthru
      _
    %v18 = vld [vmem:[%s2] sm:$0x1]
    %v19 = vlaneseq
    %vm21 = vcmp.lt.s32.totalorder %v19, 15
    %v22 = vsel %vm21, %v18, %v11
    %24 = vst [vmem:[#allocation9] sm:$0xff] %v22
    %s25 = sld [smem:[#allocation2]]
    %s26 = sld [smem:[#allocation3]]
    %v27 = vld [vmem:[#allocation9] sm:$0xff]
    %v28 = vstv %s25
    %v29 = vmul.f32 %v27, %v28
    %v30 = vstv %s26
    %v31 = vadd.f32 %v29, %v30
    %32 = vst [vmem:[%s4] sm:$0xff] %v31
    // Predicated region
    $region14: #{_lr_forward_pallas.2} parent=1 // pred_check
      _
    $region15: #{_lr_forward_pallas.2} parent=1 // pred_check_branch
      %34 = sbr.rel (0) target = $region17
    $region16: #{_lr_forward_pallas.2} parent=1 // pred_region
      _
    $region17: #{_lr_forward_pallas.2} parent=1 // pred_fallthru
      _
    // Predicated region
    $region18: #{_lr_forward_pallas.2} parent=1 // pred_check
      _
    $region19: #{_lr_forward_pallas.2} parent=1 // pred_check_branch
      %36 = sbr.rel (0) target = $region21
    $region20: #{_lr_forward_pallas.2} parent=1 // pred_region
      _
    $region21: #{_lr_forward_pallas.2} parent=1 // pred_fallthru
      _

</llo_original>
